<compile_context>
chip_gen: v6e
topology: v6e:2x2x1
jax: 0.10.0
libtpu: 0.0.40
codegen_flags: <defaults>
</compile_context>

<pallas_src>
import functools

import jax
import jax.numpy as jnp
from jax.experimental import pallas as pl
from jax.experimental.pallas import tpu as pltpu


def _gaussian_filter_kernel(el_ref, centers_ref, expand_ref, o_ref, *, c):
    # el_ref:      (tile_r, fold)  packed edge lengths (fold edges per row)
    # centers_ref: (1, W)          fold-tiled linspace centers (resident)
    # expand_ref:  (fold, W)       0/1 segment-expansion matrix (resident)
    # o_ref:       (tile_r, W)     lane-dense output tile
    #
    # Expand packed edges to full lane width on the (idle) MXU: exactly one
    # 1.0 per output lane, rest 0.0, so the result is bit-exact.
    el_w = jnp.dot(el_ref[...], expand_ref[...],
                   preferred_element_type=jnp.float32)        # (tile_r, W)
    diff = el_w - centers_ref[...]                            # broadcast (1,W)
    o_ref[...] = jnp.exp((c * diff) * diff).astype(o_ref.dtype)  # c = -0.5/step^2


def _round_up(x, m):
    return ((x + m - 1) // m) * m


def gaussian_filter(edge_lengths, *, r_min=1.0, r_max=6.0, num_edge_features=64,
                    max_tile_rows=4096, out_dtype=jnp.float32):
    """edge_lengths: [E] float32 -> [E, num_edge_features] out_dtype (f32 default)."""
    edge_lengths = jnp.asarray(edge_lengths, jnp.float32).reshape(-1)
    E = int(edge_lengths.shape[0])
    F = int(num_edge_features)
    if E == 0:
        return jnp.zeros((0, F), out_dtype)

    # Constants from __init__ (plain Python glue).
    step = (r_max - r_min) / F
    c = -0.5 / (step * step)                                  # folded scale

    # Lane-dense folding: pack `fold` edges per 128-lane output row.
    fold = (128 // F) if (F <= 128 and 128 % F == 0) else 1
    W = fold * F

    # --- Tight tile selection (padding <= ~8 rows/tile); >=2 grid steps so the
    # --- "parallel" axis can shard across v7x's two TensorCores.
    rows = -(-E // fold)
    ntiles = -(-rows // max_tile_rows)
    if ntiles == 1 and rows > 8:
        ntiles = 2
    tile_r = _round_up(-(-rows // ntiles), 8)
    R = ntiles * tile_r
    E_pad = R * fold

    el = edge_lengths if E_pad == E else jnp.pad(edge_lengths, (0, E_pad - E))
    el2 = el.reshape(R, fold)                                 # row-major pack

    # Resident small inputs: bit-consistent centers + fold-expansion matrix.
    filt = jnp.linspace(r_min, r_max, F, dtype=jnp.float32)   # [F]
    centers = jnp.tile(filt, fold).reshape(1, W)              # (1, W)
    seg = jnp.arange(W, dtype=jnp.int32) // F                 # lane -> segment
    expand = (seg[None, :] == jnp.arange(fold, dtype=jnp.int32)[:, None]
              ).astype(jnp.float32)                           # (fold, W) 0/1

    kernel = functools.partial(_gaussian_filter_kernel, c=c)

    # Honest VMEM budget: input block is lane-padded to 128 in VMEM.
    w_pad = _round_up(W, 128)
    in_slot = tile_r * 128 * 4
    out_slot = tile_r * w_pad * 4
    resident = 2 * 8 * w_pad * 4
    vmem_limit = min(max(2 * (in_slot + out_slot) + resident + (1 << 20),
                         4 << 20), 32 << 20)

    out = pl.pallas_call(
        kernel,
        out_shape=jax.ShapeDtypeStruct((R, W), out_dtype),
        grid_spec=pltpu.PrefetchScalarGridSpec(
            num_scalar_prefetch=0,
            grid=(ntiles,),
            in_specs=[
                pl.BlockSpec((tile_r, fold), lambda i: (i, 0)),
                pl.BlockSpec((1, W), lambda i: (0, 0)),        # resident
                pl.BlockSpec((fold, W), lambda i: (0, 0)),     # resident
            ],
            out_specs=pl.BlockSpec((tile_r, W), lambda i: (i, 0)),
        ),
        compiler_params=pltpu.CompilerParams(
            dimension_semantics=("parallel",),
            vmem_limit_bytes=int(vmem_limit),
        ),
        cost_estimate=pl.CostEstimate(
            flops=R * W * (2 * fold + 3),
            transcendentals=R * W,
            bytes_accessed=R * W * jnp.dtype(out_dtype).itemsize + 4 * E_pad,
        ),
    )(el2, centers, expand)

    # (R, fold*F) -> (R*fold, F) is a bit-identical row-major view.
    result = out.reshape(R * fold, F)
    if E_pad != E:        # gate the slice: only copies when padding exists
        result = result[:E]
    return result


if __name__ == "__main__":
    key = jax.random.PRNGKey(0)
    E = 200                      # small demo edge count (not tile-aligned)
    r_min, r_max, F = 1.0, 6.0, 64

    # Synthetic edge lengths in [r_min, r_max].
    edge_lengths = jax.random.uniform(key, (E,), dtype=jnp.float32,
                                      minval=r_min, maxval=r_max)

    out = gaussian_filter(edge_lengths, r_min=r_min, r_max=r_max,
                          num_edge_features=F)
    out = jax.block_until_ready(out)

    # Pure-JAX reference check (same math as the PyTorch forward).
    filt = jnp.linspace(r_min, r_max, F, dtype=jnp.float32)
    step = (r_max - r_min) / F
    ref = jnp.exp(-0.5 * jnp.square((edge_lengths[:, None] - filt) / step))
    assert out.shape == (E, F) and out.dtype == jnp.float32
    assert jnp.allclose(out, ref, rtol=1e-5, atol=1e-5)

    print("KERNEL_OK")
</pallas_src>

<mosaic_0001>
module attributes {stable_mosaic.version = 11 : i64} {
  func.func @_gaussian_filter_kernel(%arg0: i32, %arg1: memref<56x2xf32, #tpu.memory_space<vmem>>, %arg2: memref<1x128xf32, #tpu.memory_space<vmem>>, %arg3: memref<2x128xf32, #tpu.memory_space<vmem>>, %arg4: memref<56x128xf32, #tpu.memory_space<vmem>>) attributes {dimension_semantics = [#tpu.dimension_semantics<parallel>], iteration_bounds = array<i64: 2>, scalar_prefetch = 0 : i64, scratch_operands = 0 : i64, tpu.core_type = #tpu.core_type<tc>, window_params = [{transform_indices = @transform_0, window_bounds = array<i64: 56, 2>}, {pipeline_mode = #tpu.pipeline_mode<synchronous>, transform_indices = @transform_1, window_bounds = array<i64: 1, 128>}, {pipeline_mode = #tpu.pipeline_mode<synchronous>, transform_indices = @transform_2, window_bounds = array<i64: 2, 128>}, {transform_indices = @transform_3, window_bounds = array<i64: 56, 128>}]} {
    %c0 = arith.constant 0 : index
    %c0_0 = arith.constant 0 : index
    %0 = vector.load %arg1[%c0, %c0_0] : memref<56x2xf32, #tpu.memory_space<vmem>>, vector<56x2xf32>
    %c0_1 = arith.constant 0 : index
    %c0_2 = arith.constant 0 : index
    %1 = vector.load %arg3[%c0_1, %c0_2] : memref<2x128xf32, #tpu.memory_space<vmem>>, vector<2x128xf32>
    %cst = arith.constant dense<0.000000e+00> : vector<56x128xf32>
    %2 = tpu.matmul %0, %1, %cst {dimension_numbers = #tpu.dot_dimension_numbers<[1], [0], [0], [1], [0, 0, 1, 1], [], []>} : vector<56x2xf32>, vector<2x128xf32>, vector<56x128xf32> -> vector<56x128xf32>
    %c0_3 = arith.constant 0 : index
    %c0_4 = arith.constant 0 : index
    %3 = vector.load %arg2[%c0_3, %c0_4] : memref<1x128xf32, #tpu.memory_space<vmem>>, vector<1x128xf32>
    %4 = vector.broadcast %3 : vector<1x128xf32> to vector<56x128xf32>
    %5 = arith.subf %2, %4 : vector<56x128xf32>
    %cst_5 = arith.constant -81.9199981 : f32
    %6 = vector.broadcast %cst_5 : f32 to vector<56x128xf32>
    %7 = arith.mulf %6, %5 : vector<56x128xf32>
    %8 = arith.mulf %7, %5 : vector<56x128xf32>
    %9 = math.exp %8 : vector<56x128xf32>
    %c0_6 = arith.constant 0 : index
    %c0_7 = arith.constant 0 : index
    %10 = vector.load %arg4[%c0_6, %c0_7] : memref<56x128xf32, #tpu.memory_space<vmem>>, vector<56x128xf32>
    tpu.vector_store %arg4[%c0_6, %c0_7], %9 {strides = array<i32>} : memref<56x128xf32, #tpu.memory_space<vmem>>, vector<56x128xf32>,
    return
  }
  func.func @transform_0(%arg0: i32) -> (i32, i32) {
    %c0_i32 = arith.constant 0 : i32
    %c0_i32_0 = arith.constant 0 : i32
    return %arg0, %c0_i32 : i32, i32
  }
  func.func @transform_1(%arg0: i32) -> (i32, i32) {
    %c0_i32 = arith.constant 0 : i32
    %c0_i32_0 = arith.constant 0 : i32
    %c0_i32_1 = arith.constant 0 : i32
    return %c0_i32, %c0_i32_0 : i32, i32
  }
  func.func @transform_2(%arg0: i32) -> (i32, i32) {
    %c0_i32 = arith.constant 0 : i32
    %c0_i32_0 = arith.constant 0 : i32
    %c0_i32_1 = arith.constant 0 : i32
    return %c0_i32, %c0_i32_0 : i32, i32
  }
  func.func @transform_3(%arg0: i32) -> (i32, i32) {
    %c0_i32 = arith.constant 0 : i32
    %c0_i32_0 = arith.constant 0 : i32
    return %arg0, %c0_i32 : i32, i32
  }
}

</mosaic_0001>

<llo_original>
// kernel: tpu_custom_call.1
$region0: #{tpu_custom_call.1}
  #allocation0 [shape = 'u32[]', space=smem, size = 0x4, offset = 0x4, fixed_abs, tag = 'smem constant byte address 0x4 - core index']
  #allocation1 [shape = 'u32[144,128]{1,0:T(1,128)}', space=vmem, size = 0x12000, scoped, tag = 'internal scratch']
  %s0 = inlined_call_operand.vmem [shape: f32[112,2], index: 0, kind: input, shape index: {}]
  %s1 = inlined_call_operand.vmem [shape: f32[1,128], index: 1, kind: input, shape index: {}]
  %s2 = inlined_call_operand.vmem [shape: f32[2,128], index: 2, kind: input, shape index: {}]
  %s3 = inlined_call_operand.hbm [shape: f32[112,128], index: 3, kind: output, shape index: {}]
  %s4 = sld [smem:[#allocation0]]
  $region45: #{tpu_custom_call.1} parent=0
    _
  %s6 = ssub.s32 1, %s4
  %s7 = scalar_select 0, %s6, %s4
  $region1: #{tpu_custom_call.1} parent=0
    #allocation2 [shape = 'u8[57344]{0}', space=vmem, size = 0xe000, scoped, tag = 'output window, operand 0']
    #allocation3 [shape = 's32[2]{0}', space=sflag, size = 0x8, scoped, tag = 'scoped memory for tpu_custom_call.1']
    %8 = vsyncpa [#allocation3], 0
    %s9 = scalar_lea.sflag [#allocation3], 1
    %10 = vsyncpa %s9, 0
    loop: start=0, step=1, limit=4
    $region2: #{tpu_custom_call.1} parent=1 // loop_pre_header
      _
    $region3: #{tpu_custom_call.1} parent=1 // loop_header
      %s12 = sphi 0, %s16
      %p13 = scmp.ge.s32.totalorder %s12, 4
      %s22 = sphi 0, %s24
      %s25 = sphi 0, %s22
      %s26 = sphi 0, %s25
      %s42 = sphi 0, %s26
      %s46 = sphi 0, %s46
      %s48 = sphi 0, %s46
      %s49 = sphi 0, %s48
      %s63 = sphi 0, %s49
      %s67 = sphi 0, %s67
      %s69 = sphi 0, %s67
      %s70 = sphi 0, %s69
      %s84 = sphi 0, %s70
      %s90 = sphi 0, %s92
      %s93 = sphi 0, %s90
      %s94 = sphi 0, %s93
      %s110 = sphi 0, %s94
    $region4: #{tpu_custom_call.1} parent=1 // loop_header_branch
      %15 = sbr.rel (%p13) target = $region8
    $region5: #{tpu_custom_call.1} parent=1 // loop_body
      %s17 = ssub.s32 %s12, 1
      %s18 = ssub.s32 %s12, 2
      %s19 = sadd.s32 %s12, 1
      %s20 = ssub.s32 %s12, %s19
      %p21 = scmp.eq.s32.totalorder %s20, 0
      %s23 = sadd.s32 %s22, 1
      %s24 = scalar_select %p21, %s22, %s23
      %p27 = pneg %p21
      %p28 = scmp.eq.s32.totalorder %s12, 1
      %p29 = por %p27, %p28
      %p30 = scmp.ne.s32.totalorder %s22, %s25
      %p31 = scmp.eq.s32.totalorder %s12, 0
      %p32 = por %p30, %p31
      %p33 = scmp.ne.s32.totalorder %s22, %s25
      %p34 = scmp.eq.s32.totalorder %s17, 1
      %p35 = por %p33, %p34
      %p36 = scmp.ne.s32.totalorder %s25, %s26
      %p37 = scmp.eq.s32.totalorder %s17, 0
      %p38 = por %p36, %p37
      %p39 = scmp.ne.s32.totalorder %s25, %s26
      %p40 = scmp.eq.s32.totalorder %s18, 1
      %p41 = por %p39, %p40
      %p43 = scmp.ne.s32.totalorder %s26, %s42
      %p44 = scmp.eq.s32.totalorder %s18, 0
      %p45 = por %p43, %p44
      %s47 = sadd.s32 %s46, 1
      %p50 = scmp.eq.s32.totalorder %s12, 1
      %p51 = scmp.ne.s32.totalorder %s46, %s48
      %p52 = scmp.eq.s32.totalorder %s12, 0
      %p53 = por %p51, %p52
      %p54 = scmp.ne.s32.totalorder %s46, %s48
      %p55 = scmp.eq.s32.totalorder %s17, 1
      %p56 = por %p54, %p55
      %p57 = scmp.ne.s32.totalorder %s48, %s49
      %p58 = scmp.eq.s32.totalorder %s17, 0
      %p59 = por %p57, %p58
      %p60 = scmp.ne.s32.totalorder %s48, %s49
      %p61 = scmp.eq.s32.totalorder %s18, 1
      %p62 = por %p60, %p61
      %p64 = scmp.ne.s32.totalorder %s49, %s63
      %p65 = scmp.eq.s32.totalorder %s18, 0
      %p66 = por %p64, %p65
      %s68 = sadd.s32 %s67, 1
      %p71 = scmp.eq.s32.totalorder %s12, 1
      %p72 = scmp.ne.s32.totalorder %s67, %s69
      %p73 = scmp.eq.s32.totalorder %s12, 0
      %p74 = por %p72, %p73
      %p75 = scmp.ne.s32.totalorder %s67, %s69
      %p76 = scmp.eq.s32.totalorder %s17, 1
      %p77 = por %p75, %p76
      %p78 = scmp.ne.s32.totalorder %s69, %s70
      %p79 = scmp.eq.s32.totalorder %s17, 0
      %p80 = por %p78, %p79
      %p81 = scmp.ne.s32.totalorder %s69, %s70
      %p82 = scmp.eq.s32.totalorder %s18, 1
      %p83 = por %p81, %p82
      %p85 = scmp.ne.s32.totalorder %s70, %s84
      %p86 = scmp.eq.s32.totalorder %s18, 0
      %p87 = por %p85, %p86
      %s88 = ssub.s32 %s12, %s19
      %p89 = scmp.eq.s32.totalorder %s88, 0
      %s91 = sadd.s32 %s90, 1
      %s92 = scalar_select %p89, %s90, %s91
      %p95 = pneg %p89
      %p96 = scmp.eq.s32.totalorder %s12, 1
      %p97 = por %p95, %p96
      %p98 = scmp.ne.s32.totalorder %s90, %s93
      %p99 = scmp.eq.s32.totalorder %s12, 0
      %p100 = por %p98, %p99
      %p101 = scmp.ne.s32.totalorder %s90, %s93
      %p102 = scmp.eq.s32.totalorder %s17, 1
      %p103 = por %p101, %p102
      %p104 = scmp.ne.s32.totalorder %s93, %s94
      %p105 = scmp.eq.s32.totalorder %s17, 0
      %p106 = por %p104, %p105
      %p107 = scmp.ne.s32.totalorder %s93, %s94
      %p108 = scmp.eq.s32.totalorder %s18, 1
      %p109 = por %p107, %p108
      %p111 = scmp.ne.s32.totalorder %s94, %s110
      %p112 = scmp.eq.s32.totalorder %s18, 0
      %p113 = por %p111, %p112
      %p114 = scmp.le.s32.totalorder 1, %s12
      %p115 = scmp.lt.s32.totalorder %s12, 3
      %p116 = pnand %p114, %p115
      %p117 = pneg %p116
      // Predicated region
      $region9: #{tpu_custom_call.1} parent=5 // pred_check
        _
      $region10: #{tpu_custom_call.1} parent=5 // pred_check_branch
        %119 = sbr.rel (%p116) target = $region12
      $region11: #{tpu_custom_call.1} parent=5 // pred_region
        %s120 = ssub.s32 %s12, 1
        // Predicated region
        $region13: #{tpu_custom_call.1} parent=11 // pred_check
          %p121 = pneg %p59
        $region14: #{tpu_custom_call.1} parent=11 // pred_check_branch
          %123 = sbr.rel (%p121) target = $region16
        $region15: #{tpu_custom_call.1} parent=11 // pred_region
          _
        $region16: #{tpu_custom_call.1} parent=11 // pred_fallthru
          _
        // Predicated region
        $region17: #{tpu_custom_call.1} parent=11 // pred_check
          %p124 = pneg %p80
        $region18: #{tpu_custom_call.1} parent=11 // pred_check_branch
          %126 = sbr.rel (%p124) target = $region20
        $region19: #{tpu_custom_call.1} parent=11 // pred_region
          _
        $region20: #{tpu_custom_call.1} parent=11 // pred_fallthru
          _
      $region12: #{tpu_custom_call.1} parent=5 // pred_fallthru
        _
      %p127 = scmp.lt.s32.totalorder %s12, 2
      // Predicated region
      $region21: #{tpu_custom_call.1} parent=5 // pred_check
        %p128 = pneg %p127
      $region22: #{tpu_custom_call.1} parent=5 // pred_check_branch
        %130 = sbr.rel (%p128) target = $region24
      $region23: #{tpu_custom_call.1} parent=5 // pred_region
        // Predicated region
        $region25: #{tpu_custom_call.1} parent=23 // pred_check
          %p131 = pneg %p32
        $region26: #{tpu_custom_call.1} parent=23 // pred_check_branch
          %133 = sbr.rel (%p131) target = $region28
        $region27: #{tpu_custom_call.1} parent=23 // pred_region
          %s134 = smul.u32 7, %s12
          %p135 = scmp.lt.s32.totalorder %s134, 13
          %s136 = scalar_select %p135, %s134, 13
          %s137 = smul.addr %s136, 8
          %s138 = scalar_lea.vmem %s0, %s137
          %s139 = smul.u32 7, %s12
        $region28: #{tpu_custom_call.1} parent=23 // pred_fallthru
          _
      $region24: #{tpu_custom_call.1} parent=5 // pred_fallthru
        _
      %p140 = scmp.le.s32.totalorder 1, %s12
      %p141 = scmp.lt.s32.totalorder %s12, 3
      %p142 = pnand %p140, %p141
      %p143 = pneg %p142
      // Predicated region
      $region29: #{tpu_custom_call.1} parent=5 // pred_check
        _
      $region30: #{tpu_custom_call.1} parent=5 // pred_check_branch
        %145 = sbr.rel (%p142) target = $region32
      $region31: #{tpu_custom_call.1} parent=5 // pred_region
        %s146 = ssub.s32 %s12, 1
        %s147 = smul.u32 7, %s17
        %p148 = scmp.lt.s32.totalorder %s147, 13
        %s149 = scalar_select %p148, %s147, 13
        %s150 = smul.addr %s149, 8
        %s151 = scalar_lea.vmem %s0, %s150
        %p152 = pneg %p38
        %p153 = pneg %p35
        %p154 = pneg %p59
        %p155 = pneg %p56
        %p156 = pneg %p80
        %p157 = pneg %p77
        %p158 = pneg %p106
        %p159 = pneg %p103
        %s160 = sand.u32 %s93, 1
        %s161 = scalar_lea.sflag [#allocation3], %s160
        %s162 = sand.u32 %s93, 1
        %s163 = smul.addr %s162, 56
        %s164 = scalar_lea.vmem [#allocation2], %s163
        %s165 = smul.u32 7, %s17
        %p166 = scmp.lt.s32.totalorder %s165, 13
        %s167 = scalar_select %p166, %s165, 13
        %s168 = smul.addr %s167, 8
        %s169 = scalar_lea.vmem %s0, %s168
        %s170 = smul.u32 7, %s17
        %s171 = smul.u32 7, %s17
        %v172 = vld [vmem:[%s169] sm:$0xff]
        %v173 = vld [vmem:[%s169 + $0x8] sm:$0xff]
        %v174 = vld [vmem:[%s169 + $0x10] sm:$0xff]
        %v175 = vld [vmem:[%s169 + $0x18] sm:$0xff]
        %v176 = vld [vmem:[%s169 + $0x20] sm:$0xff]
        %v177 = vld [vmem:[%s169 + $0x28] sm:$0xff]
        %v178 = vld [vmem:[%s169 + $0x30] sm:$0xff]
        %v179 = vld [vmem:[%s2] sm:$0x3]
        %vm180 = vcmask 15360
        %v182 = vsel %vm180, %v172, 0
        %v185 = vsel %vm180, %v173, 0
        %v188 = vsel %vm180, %v174, 0
        %v191 = vsel %vm180, %v175, 0
        %v194 = vsel %vm180, %v176, 0
        %v197 = vsel %vm180, %v177, 0
        %v200 = vsel %vm180, %v178, 0
        %vm202 = vcmask 1041408
        %v204 = vsel %vm202, %v179, 0
        %206 = vmatprep.subr.mxu0 0.0
        %207 = vmatpush1.msra.mxu0 0.0
        %208 = vmatprep.subr.mxu0 0.0
        %209 = vmatpush1.msra.mxu0 0.0
        %210 = vmatprep.subr.mxu0 0.0
        %211 = vmatpush1.msra.mxu0 0.0
        %212 = vmatprep.subr.mxu0 0.0
        %213 = vmatpush1.msra.mxu0 0.0
        %214 = vmatprep.subr.mxu0 0.0
        %215 = vmatpush1.msra.mxu0 0.0
        %216 = vmatprep.subr.mxu0 0.0
        %217 = vmatpush1.msra.mxu0 0.0
        %218 = vmatprep.subr.mxu0 0.0
        %219 = vmatpush1.msra.mxu0 0.0
        %220 = vmatprep.subr.mxu0 0.0
        %221 = vmatpush1.msra.mxu0 0.0
        %222 = vmatprep.subr.mxu0 0.0
        %223 = vmatpush1.msra.mxu0 0.0
        %224 = vmatprep.subr.mxu0 0.0
        %225 = vmatpush1.msra.mxu0 0.0
        %226 = vmatprep.subr.mxu0 0.0
        %227 = vmatpush1.msra.mxu0 0.0
        %228 = vmatprep.subr.mxu0 0.0
        %229 = vmatpush1.msra.mxu0 0.0
        %230 = vmatprep.subr.mxu0 0.0
        %231 = vmatpush1.msra.mxu0 0.0
        %232 = vmatprep.subr.mxu0 0.0
        %233 = vmatpush1.msra.mxu0 0.0
        %234 = vmatprep.subr.mxu0 0.0
        %235 = vmatpush1.msra.mxu0 0.0
        %236 = vmatprep.subr.mxu0 0.0
        %237 = vmatpush1.msra.mxu0 %v204
        %238 = vmatprep.subr.mxu0 0.0
        %239 = vmatpush2.msra.mxu0 0.0
        %240 = vmatprep.subr.mxu0 0.0
        %241 = vmatpush2.msra.mxu0 0.0
        %242 = vmatprep.subr.mxu0 0.0
        %243 = vmatpush2.msra.mxu0 0.0
        %244 = vmatprep.subr.mxu0 0.0
        %245 = vmatpush2.msra.mxu0 0.0
        %246 = vmatprep.subr.mxu0 0.0
        %247 = vmatpush2.msra.mxu0 0.0
        %248 = vmatprep.subr.mxu0 0.0
        %249 = vmatpush2.msra.mxu0 0.0
        %250 = vmatprep.subr.mxu0 0.0
        %251 = vmatpush2.msra.mxu0 0.0
        %252 = vmatprep.subr.mxu0 0.0
        %253 = vmatpush2.msra.mxu0 0.0
        %254 = vmatprep.subr.mxu0 0.0
        %255 = vmatpush2.msra.mxu0 0.0
        %256 = vmatprep.subr.mxu0 0.0
        %257 = vmatpush2.msra.mxu0 0.0
        %258 = vmatprep.subr.mxu0 0.0
        %259 = vmatpush2.msra.mxu0 0.0
        %260 = vmatprep.subr.mxu0 0.0
        %261 = vmatpush2.msra.mxu0 0.0
        %262 = vmatprep.subr.mxu0 0.0
        %263 = vmatpush2.msra.mxu0 0.0
        %264 = vmatprep.subr.mxu0 0.0
        %265 = vmatpush2.msra.mxu0 0.0
        %266 = vmatprep.subr.mxu0 0.0
        %267 = vmatpush2.msra.mxu0 0.0
        %268 = vmatprep.subr.mxu0 0.0
        %269 = vmatpush2.msra.mxu0 0.0
        %270 = vmatprep.mubr.f32.mxu0 0.0
        %271 = vmatmul.mubr.f32.gmra.mxu0 %v182
        %v272 = vpop.f32.mrf.mxu0
        %v273 = vadd.f32 0.0, %v272
        %v274 = vpop.f32.mrf.mxu0
        %275 = vmatprep.mubr.f32.mxu0 0.0
        %276 = vmatmul.mubr.f32.gmra.mxu0 %v185
        %v277 = vpop.f32.mrf.mxu0
        %v278 = vadd.f32 0.0, %v277
        %v279 = vpop.f32.mrf.mxu0
        %280 = vmatprep.mubr.f32.mxu0 0.0
        %281 = vmatmul.mubr.f32.gmra.mxu0 %v188
        %v282 = vpop.f32.mrf.mxu0
        %v283 = vadd.f32 0.0, %v282
        %v284 = vpop.f32.mrf.mxu0
        %285 = vmatprep.mubr.f32.mxu0 0.0
        %286 = vmatmul.mubr.f32.gmra.mxu0 %v191
        %v287 = vpop.f32.mrf.mxu0
        %v288 = vadd.f32 0.0, %v287
        %v289 = vpop.f32.mrf.mxu0
        %290 = vmatprep.mubr.f32.mxu0 0.0
        %291 = vmatmul.mubr.f32.gmra.mxu0 %v194
        %v292 = vpop.f32.mrf.mxu0
        %v293 = vadd.f32 0.0, %v292
        %v294 = vpop.f32.mrf.mxu0
        %295 = vmatprep.mubr.f32.mxu0 0.0
        %296 = vmatmul.mubr.f32.gmra.mxu0 %v197
        %v297 = vpop.f32.mrf.mxu0
        %v298 = vadd.f32 0.0, %v297
        %v299 = vpop.f32.mrf.mxu0
        %300 = vmatprep.mubr.f32.mxu0 0.0
        %301 = vmatmul.mubr.f32.gmra.mxu0 %v200
        %v302 = vpop.f32.mrf.mxu0
        %v303 = vadd.f32 0.0, %v302
        %v304 = vpop.f32.mrf.mxu0
        %305 = vdwg.mxu0
        %v306 = vld [vmem:[%s1] sm:$0x1]
        %v308 = vlaneseq
        %v309 = vshrl.u32 %v308, 7
        %v310 = vsub.s32 0, %v309
        %v311 = vrot.slane %v306, %v310
        %v313 = vsub.f32 %v273, %v311
        %v314 = vsub.f32 %v278, %v311
        %v315 = vsub.f32 %v283, %v311
        %v316 = vsub.f32 %v288, %v311
        %v317 = vsub.f32 %v293, %v311
        %v318 = vsub.f32 %v298, %v311
        %v319 = vsub.f32 %v303, %v311
        %v320 = vmul.f32 %v313, -81.92
        %v321 = vmul.f32 %v314, -81.92
        %v322 = vmul.f32 %v315, -81.92
        %v323 = vmul.f32 %v316, -81.92
        %v324 = vmul.f32 %v317, -81.92
        %v325 = vmul.f32 %v318, -81.92
        %v326 = vmul.f32 %v319, -81.92
        %v327 = vmul.f32 %v320, %v313
        %v328 = vmul.f32 %v321, %v314
        %v329 = vmul.f32 %v322, %v315
        %v330 = vmul.f32 %v323, %v316
        %v331 = vmul.f32 %v324, %v317
        %v332 = vmul.f32 %v325, %v318
        %v333 = vmul.f32 %v326, %v319
        %v334 = vmul.f32 %v327, 1.442695
        %v335 = vpow.pop %v334
        %v336 = vmul.f32 %v328, 1.442695
        %v337 = vpow.pop %v336
        %v338 = vmul.f32 %v329, 1.442695
        %v339 = vpow.pop %v338
        %v340 = vmul.f32 %v330, 1.442695
        %v341 = vpow.pop %v340
        %v342 = vmul.f32 %v331, 1.442695
        %v343 = vpow.pop %v342
        %v344 = vmul.f32 %v332, 1.442695
        %v345 = vpow.pop %v344
        %v346 = vmul.f32 %v333, 1.442695
        %v347 = vpow.pop %v346
        %348 = vst [vmem:[%s164] sm:$0xff] %v335
        %349 = vst [vmem:[%s164 + $0x8] sm:$0xff] %v337
        %350 = vst [vmem:[%s164 + $0x10] sm:$0xff] %v339
        %351 = vst [vmem:[%s164 + $0x18] sm:$0xff] %v341
        %352 = vst [vmem:[%s164 + $0x20] sm:$0xff] %v343
        %353 = vst [vmem:[%s164 + $0x28] sm:$0xff] %v345
        %354 = vst [vmem:[%s164 + $0x30] sm:$0xff] %v347
        %s355 = sand.u32 %s93, 1
        %s356 = scalar_lea.sflag [#allocation3], %s355
        %s357 = sand.u32 %s93, 1
        %s358 = smul.addr %s357, 56
        %s359 = scalar_lea.vmem [#allocation2], %s358
        // Predicated region
        $region33: #{tpu_custom_call.1} parent=31 // pred_check
          %p360 = pneg %p103
        $region34: #{tpu_custom_call.1} parent=31 // pred_check_branch
          %362 = sbr.rel (%p360) target = $region36
        $region35: #{tpu_custom_call.1} parent=31 // pred_region
          %s363 = smul.u32 7, %s17
          %s365 = ssub.s32 896, 896
          %366 = vsyncadd %s356, %s365
          %s367 = smul.addr %s363, 128
          %s368 = scalar_lea.hbm %s3, %s367
          %s369 = sshll.u32 %s359, 4
          %s370 = int_to_ptr.vmem [resolvable:$true] %s369
          %375 = dma.vmem_to_hbm [thread:$0]  %s370, 896, %s368, %s356, 128, 128, 8
        $region36: #{tpu_custom_call.1} parent=31 // pred_fallthru
          _
      $region32: #{tpu_custom_call.1} parent=5 // pred_fallthru
        _
      %p376 = scmp.le.s32.totalorder 2, %s12
      // Predicated region
      $region37: #{tpu_custom_call.1} parent=5 // pred_check
        %p377 = pneg %p376
      $region38: #{tpu_custom_call.1} parent=5 // pred_check_branch
        %379 = sbr.rel (%p377) target = $region40
      $region39: #{tpu_custom_call.1} parent=5 // pred_region
        %s380 = ssub.s32 %s12, 2
        // Predicated region
        $region41: #{tpu_custom_call.1} parent=39 // pred_check
          %p381 = pneg %p109
        $region42: #{tpu_custom_call.1} parent=39 // pred_check_branch
          %383 = sbr.rel (%p381) target = $region44
        $region43: #{tpu_custom_call.1} parent=39 // pred_region
          %s384 = sand.u32 %s94, 1
          %s385 = scalar_lea.sflag [#allocation3], %s384
          %s386 = sand.u32 %s94, 1
          %s387 = smul.addr %s386, 56
          %s388 = scalar_lea.vmem [#allocation2], %s387
          %389 = dma.done %s385, 896
        $region44: #{tpu_custom_call.1} parent=39 // pred_fallthru
          _
      $region40: #{tpu_custom_call.1} parent=5 // pred_fallthru
        _
    $region6: #{tpu_custom_call.1} parent=1 // loop_footer
      %s16 = sadd.s32 1, %s12
    $region7: #{tpu_custom_call.1} parent=1 // loop_footer_branch
      %11 = sbr.rel target = $region3
    $region8: #{tpu_custom_call.1} parent=1 // loop_exit
      _
    %390 = vsyncpa [#allocation3], 1
    %s391 = scalar_lea.sflag [#allocation3], 1
    %392 = vsyncpa %s391, 1

</llo_original>
